<compile_context>
chip_gen: v7x
topology: tpu7x:2x2x1
jax: 0.10.0
libtpu: 0.0.40
codegen_flags: <defaults>
</compile_context>

<pallas_src>
import math
import functools

import jax
import jax.numpy as jnp
from jax import lax
from jax.experimental import pallas as pl
from jax.experimental.pallas import tpu as pltpu

BN_EPS = 1e-5  # PyTorch BatchNorm1d default


def _encoder_kernel(x_ref,
                    wqkv_ref, bqkv_ref,
                    wo_ref, bo_ref,
                    mask_ref,
                    g1_ref, be1_ref,
                    w1_ref, b1_ref, w2_ref, b2_ref,
                    g2_ref, be2_ref,
                    out_ref, *, batch, seq_len, heads):
    B, S, H = batch, seq_len, heads
    x2 = x_ref[...]                                    # (B*S, D) f32
    D = x2.shape[-1]
    N = H * S                                          # stacked (head, key) axis

    def linear(inp_f32, w_ref, b_ref):
        # bf16 MXU operands, f32 accumulation; bias add stays f32.
        return jnp.dot(inp_f32.astype(jnp.bfloat16), w_ref[...],
                       preferred_element_type=jnp.float32) + b_ref[...]

    # ---- MultiHeadAttention -------------------------------------------------
    # Fused QKV projection (1/sqrt(dh) already folded into the Q block).
    qkv = linear(x2, wqkv_ref, bqkv_ref)               # (B*S, 3D) f32
    q3 = qkv[:, 0 * D:1 * D].reshape(B, S, D)
    k3 = qkv[:, 1 * D:2 * D].reshape(B, S, D)
    v3 = qkv[:, 2 * D:3 * D].reshape(B, S, D)

    # Head-block mask: mask[h*S + k, h2*dh + d] = 1.0 iff h == h2.
    mask_f32 = mask_ref[...]                           # (N, D)
    mask4 = mask_f32.reshape(1, H, S, D)

    # Block-diagonal stacked K / V: (B, H*S, D); row block h only keeps its
    # own head's dh columns.  Built with a broadcast + elementwise mask
    # (layout-preserving reshape), no concatenates, no transposes.
    kblk = (k3[:, None, :, :] * mask4).reshape(B, N, D).astype(jnp.bfloat16)
    vblk = (v3[:, None, :, :] * mask4).reshape(B, N, D).astype(jnp.bfloat16)
    qb = q3.astype(jnp.bfloat16)

    # Scores: s[b, q, h*S + k] = <q_head_h, k_head_h> / sqrt(dh)   (scale folded)
    s = jnp.einsum('bqd,bnd->bqn', qb, kblk,
                   preferred_element_type=jnp.float32)  # (B, S, N) f32
    # Global per-row max is constant within each head -> softmax-invariant.
    s = s - jnp.max(s, axis=-1, keepdims=True)
    e = jnp.exp(s)
    eb = e.astype(jnp.bfloat16)

    # Un-normalized per-head attention output, already in (B, S, D) column
    # order (head h -> columns [h*dh, (h+1)*dh)) -> no head re-merge needed.
    o_un = jnp.einsum('bqn,bnd->bqd', eb, vblk,
                      preferred_element_type=jnp.float32)           # (B, S, D)
    # Per-(row, head) softmax denominator, broadcast over that head's columns
    # by the same mask:  denom[bq, h*dh+d] = sum_k exp(s[bq, h*S+k]).
    denom = jnp.dot(eb.reshape(B * S, N), mask_f32.astype(jnp.bfloat16),
                    preferred_element_type=jnp.float32)             # (B*S, D)
    attn = o_un.reshape(B * S, D) * pl.reciprocal(denom, approx=True)

    mo = linear(attn, wo_ref, bo_ref)                  # output projection
    y = mo + x2                                        # residual 1 (dropout1 -> identity)

    # ---- BatchNorm1d(seq_len): per-seq-position stats over (batch, d_model) -
    def batchnorm_seq(t2d, g_ref, be_ref):
        t3 = t2d.reshape(B, S, D)
        mu = jnp.sum(jnp.sum(t3, axis=2, keepdims=True),
                     axis=0, keepdims=True) * (1.0 / float(B * D))  # (1,S,1)
        c = t3 - mu
        var = jnp.sum(jnp.sum(c * c, axis=2, keepdims=True),
                      axis=0, keepdims=True) * (1.0 / float(B * D))  # biased
        inv = lax.rsqrt(var + BN_EPS)
        # gamma / beta arrive pre-shaped (1, S, 1): broadcast is a no-op layout-wise.
        return c * (inv * g_ref[...]) + be_ref[...]     # (B, S, D)

    y1 = batchnorm_seq(y, g1_ref, be1_ref).reshape(B * S, D)

    # ---- FFNN (internal residual) + outer residual (dropout2 -> identity) ---
    hdn = jnp.maximum(linear(y1, w1_ref, b1_ref), 0.0)  # (B*S, 4D)
    f = linear(hdn, w2_ref, b2_ref) + y1                # ffnn(y1)
    z = f + y1

    out3 = batchnorm_seq(z, g2_ref, be2_ref)            # (B, S, D)
    # Lane-dense store: (B, S*D) slab (multiple of 128 lanes -> unmasked vst).
    out_ref[...] = out3.reshape(B, S * D).astype(out_ref.dtype)


# ---------------------------------------------------------------------------
# Parameter construction (deterministic, mimics PyTorch default inits)
# ---------------------------------------------------------------------------
def make_params(key, seq_len, d_model):
    def lin(k, fan_in, fan_out):
        kw, kb = jax.random.split(k)
        bound = 1.0 / math.sqrt(fan_in)
        w = jax.random.uniform(kw, (fan_in, fan_out), jnp.float32, -bound, bound)
        b = jax.random.uniform(kb, (1, fan_out), jnp.float32, -bound, bound)
        return w, b

    keys = jax.random.split(key, 6)
    wq, bq = lin(keys[0], d_model, d_model)
    wk, bk = lin(keys[1], d_model, d_model)
    wv, bv = lin(keys[2], d_model, d_model)
    wo, bo = lin(keys[3], d_model, d_model)
    w1, b1 = lin(keys[4], d_model, d_model * 4)
    w2, b2 = lin(keys[5], d_model * 4, d_model)
    g1 = jnp.ones((1, seq_len), jnp.float32)
    be1 = jnp.zeros((1, seq_len), jnp.float32)
    g2 = jnp.ones((1, seq_len), jnp.float32)
    be2 = jnp.zeros((1, seq_len), jnp.float32)
    return (wq, bq, wk, bk, wv, bv, wo, bo,
            g1, be1, w1, b1, w2, b2, g2, be2)


def _pack_kernel_params(params, heads):
    """One-time host-side packing: fused+scaled QKV weight, bf16 MXU weights,
    head-block mask, and (1, S, 1)-shaped BatchNorm gamma/beta."""
    (wq, bq, wk, bk, wv, bv, wo, bo,
     g1, be1, w1, b1, w2, b2, g2, be2) = params
    D = wq.shape[0]
    dh = D // heads
    S = g1.shape[-1]
    scale = 1.0 / math.sqrt(dh)

    # Fused QKV with the softmax scale folded into the Q block (weight AND bias).
    wqkv = jnp.concatenate([wq * scale, wk, wv], axis=1).astype(jnp.bfloat16)  # (D, 3D)
    bqkv = jnp.concatenate([bq * scale, bk, bv], axis=1)                       # (1, 3D) f32

    # Head-block mask (H*S, D): row h*S+k owns columns [h*dh, (h+1)*dh).
    row_head = jnp.arange(heads * S) // S
    col_head = jnp.arange(D) // dh
    mask = (row_head[:, None] == col_head[None, :]).astype(jnp.float32)

    def vec3(v):                       # (1, S) -> (1, S, 1): no in-kernel reshape
        return v.reshape(1, S, 1)

    return (wqkv, bqkv,
            wo.astype(jnp.bfloat16), bo,
            mask,
            vec3(g1), vec3(be1),
            w1.astype(jnp.bfloat16), b1,
            w2.astype(jnp.bfloat16), b2,
            vec3(g2), vec3(be2))


def _cost_estimate(B, S, D, H, kparams):
    N = H * S
    flops = (2 * B * S * D * 3 * D            # fused QKV projection
             + 2 * B * S * N * D * 2          # masked QK^T and PV
             + 2 * B * S * N * D              # denominator matmul
             + 2 * B * S * D * D              # output projection
             + 2 * B * S * D * 4 * D * 2)     # FFN (two matmuls)
    transcendentals = B * S * N + B * S * D + 2 * S   # exp + recip + rsqrt
    bytes_accessed = (2 * B * S * D * 4                # x in + out
                      + sum(int(p.size) * p.dtype.itemsize for p in kparams))
    return pl.CostEstimate(flops=int(flops),
                           transcendentals=int(transcendentals),
                           bytes_accessed=int(bytes_accessed))


def _encoder_forward_impl(x, kparams, heads):
    B, S, D = x.shape
    kernel = functools.partial(_encoder_kernel, batch=B, seq_len=S, heads=heads)
    out2 = pl.pallas_call(
        kernel,
        out_shape=jax.ShapeDtypeStruct((B, S * D), jnp.float32),
        in_specs=[pl.BlockSpec(memory_space=pltpu.MemorySpace.VMEM)]
                 * (1 + len(kparams)),
        out_specs=pl.BlockSpec(memory_space=pltpu.MemorySpace.VMEM),
        cost_estimate=_cost_estimate(B, S, D, heads, kparams),
    )(x.reshape(B * S, D), *kparams)
    return out2.reshape(B, S, D)


# jit'ed entry point; packed weights are passed in (packed once, outside).
encoder_forward = jax.jit(_encoder_forward_impl, static_argnames=("heads",))


# ---------------------------------------------------------------------------
# Pure-JAX f32 reference (same math) for a sanity check
# ---------------------------------------------------------------------------
def encoder_ref(x, params, heads):
    (wq, bq, wk, bk, wv, bv, wo, bo,
     g1, be1, w1, b1, w2, b2, g2, be2) = params
    B, S, D = x.shape
    dh = D // heads
    x2 = x.reshape(B * S, D)
    q = (x2 @ wq + bq).reshape(B, S, heads, dh).transpose(0, 2, 1, 3)
    k = (x2 @ wk + bk).reshape(B, S, heads, dh).transpose(0, 2, 1, 3)
    v = (x2 @ wv + bv).reshape(B, S, heads, dh).transpose(0, 2, 1, 3)
    s = jnp.einsum("bhqd,bhkd->bhqk", q, k) / math.sqrt(dh)
    p = jax.nn.softmax(s, axis=-1)
    o = jnp.einsum("bhqk,bhkd->bhqd", p, v).transpose(0, 2, 1, 3).reshape(B * S, D)
    mo = o @ wo + bo
    y = (mo + x2).reshape(B, S, D)

    def bn(t, g, be):
        mu = jnp.mean(t, axis=(0, 2), keepdims=True)
        var = jnp.mean((t - mu) ** 2, axis=(0, 2), keepdims=True)
        return ((t - mu) / jnp.sqrt(var + BN_EPS) * g.reshape(1, S, 1)
                + be.reshape(1, S, 1))

    y1 = bn(y, g1, be1).reshape(B * S, D)
    f = jnp.maximum(y1 @ w1 + b1, 0.0) @ w2 + b2 + y1
    z = (f + y1).reshape(B, S, D)
    return bn(z, g2, be2)


if __name__ == "__main__":
    B, HEADS, S, D = 2, 4, 8, 32
    key = jax.random.PRNGKey(0)
    kx, kp = jax.random.split(key)
    x = jax.random.normal(kx, (B, S, D), jnp.float32)
    params = make_params(kp, S, D)

    # Pack once (QKV fuse + scale fold + bf16 casts + mask); reuse per call.
    kparams = _pack_kernel_params(params, HEADS)

    out = encoder_forward(x, kparams, heads=HEADS)
    jax.block_until_ready(out)

    assert out.shape == (B, S, D) and out.dtype == jnp.float32

    ref = encoder_ref(x, params, HEADS)
    assert jnp.all(jnp.isfinite(out))
    assert jnp.allclose(out, ref, rtol=5e-2, atol=5e-2), (
        f"max abs diff {jnp.max(jnp.abs(out - ref))}")

    print("KERNEL_OK")
</pallas_src>

<mosaic_0001>
module attributes {stable_mosaic.version = 11 : i64} {
  func.func @_encoder_kernel(%arg0: memref<16x32xf32, #tpu.memory_space<vmem>>, %arg1: memref<32x96xbf16, #tpu.memory_space<vmem>>, %arg2: memref<1x96xf32, #tpu.memory_space<vmem>>, %arg3: memref<32x32xbf16, #tpu.memory_space<vmem>>, %arg4: memref<1x32xf32, #tpu.memory_space<vmem>>, %arg5: memref<32x32xf32, #tpu.memory_space<vmem>>, %arg6: memref<1x8x1xf32, #tpu.memory_space<vmem>>, %arg7: memref<1x8x1xf32, #tpu.memory_space<vmem>>, %arg8: memref<32x128xbf16, #tpu.memory_space<vmem>>, %arg9: memref<1x128xf32, #tpu.memory_space<vmem>>, %arg10: memref<128x32xbf16, #tpu.memory_space<vmem>>, %arg11: memref<1x32xf32, #tpu.memory_space<vmem>>, %arg12: memref<1x8x1xf32, #tpu.memory_space<vmem>>, %arg13: memref<1x8x1xf32, #tpu.memory_space<vmem>>, %arg14: memref<2x256xf32, #tpu.memory_space<vmem>>) attributes {dimension_semantics = [], scalar_prefetch = 0 : i64, scratch_operands = 0 : i64, tpu.core_type = #tpu.core_type<tc>} {
    %c0 = arith.constant 0 : index
    %c0_0 = arith.constant 0 : index
    %0 = vector.load %arg0[%c0, %c0_0] : memref<16x32xf32, #tpu.memory_space<vmem>>, vector<16x32xf32>
    %1 = arith.truncf %0 : vector<16x32xf32> to vector<16x32xbf16>
    %c0_1 = arith.constant 0 : index
    %c0_2 = arith.constant 0 : index
    %2 = vector.load %arg1[%c0_1, %c0_2] : memref<32x96xbf16, #tpu.memory_space<vmem>>, vector<32x96xbf16>
    %cst = arith.constant dense<0.000000e+00> : vector<16x96xf32>
    %3 = tpu.matmul %1, %2, %cst {dimension_numbers = #tpu.dot_dimension_numbers<[1], [0], [0], [1], [0, 0, 1, 1], [], []>} : vector<16x32xbf16>, vector<32x96xbf16>, vector<16x96xf32> -> vector<16x96xf32>
    %c0_3 = arith.constant 0 : index
    %c0_4 = arith.constant 0 : index
    %4 = vector.load %arg2[%c0_3, %c0_4] : memref<1x96xf32, #tpu.memory_space<vmem>>, vector<1x96xf32>
    %5 = vector.broadcast %4 : vector<1x96xf32> to vector<16x96xf32>
    %6 = arith.addf %3, %5 : vector<16x96xf32>
    %7 = vector.extract_strided_slice %6 {offsets = [0, 0], sizes = [16, 32], strides = [1, 1]} : vector<16x96xf32> to vector<16x32xf32>
    %8 = vector.shape_cast %7 : vector<16x32xf32> to vector<2x8x32xf32>
    %9 = vector.extract_strided_slice %6 {offsets = [0, 32], sizes = [16, 32], strides = [1, 1]} : vector<16x96xf32> to vector<16x32xf32>
    %10 = vector.shape_cast %9 : vector<16x32xf32> to vector<2x8x32xf32>
    %11 = vector.extract_strided_slice %6 {offsets = [0, 64], sizes = [16, 32], strides = [1, 1]} : vector<16x96xf32> to vector<16x32xf32>
    %12 = vector.shape_cast %11 : vector<16x32xf32> to vector<2x8x32xf32>
    %c0_5 = arith.constant 0 : index
    %c0_6 = arith.constant 0 : index
    %13 = vector.load %arg5[%c0_5, %c0_6] : memref<32x32xf32, #tpu.memory_space<vmem>>, vector<32x32xf32>
    %14 = vector.shape_cast %13 : vector<32x32xf32> to vector<1x4x8x32xf32>
    %15 = vector.shape_cast %10 : vector<2x8x32xf32> to vector<2x1x8x32xf32>
    %16 = vector.broadcast %15 : vector<2x1x8x32xf32> to vector<2x4x8x32xf32>
    %17 = vector.broadcast %14 : vector<1x4x8x32xf32> to vector<2x4x8x32xf32>
    %18 = arith.mulf %16, %17 : vector<2x4x8x32xf32>
    %19 = vector.shape_cast %18 : vector<2x4x8x32xf32> to vector<2x32x32xf32>
    %20 = arith.truncf %19 : vector<2x32x32xf32> to vector<2x32x32xbf16>
    %21 = vector.shape_cast %12 : vector<2x8x32xf32> to vector<2x1x8x32xf32>
    %22 = vector.broadcast %21 : vector<2x1x8x32xf32> to vector<2x4x8x32xf32>
    %23 = vector.broadcast %14 : vector<1x4x8x32xf32> to vector<2x4x8x32xf32>
    %24 = arith.mulf %22, %23 : vector<2x4x8x32xf32>
    %25 = vector.shape_cast %24 : vector<2x4x8x32xf32> to vector<2x32x32xf32>
    %26 = arith.truncf %25 : vector<2x32x32xf32> to vector<2x32x32xbf16>
    %27 = arith.truncf %8 : vector<2x8x32xf32> to vector<2x8x32xbf16>
    "tpu.trace_start"() <{level = 10 : i32, message = "bqd,bnd->bqn"}> : () -> ()
    %cst_7 = arith.constant dense<0.000000e+00> : vector<2x8x32xf32>
    %28 = tpu.matmul %27, %20, %cst_7 {dimension_numbers = #tpu.dot_dimension_numbers<[2], [2], [1], [1], [0, 0, 0, 1, 1, 1], [0], [0]>} : vector<2x8x32xbf16>, vector<2x32x32xbf16>, vector<2x8x32xf32> -> vector<2x8x32xf32>
    "tpu.trace_stop"() : () -> ()
    %cst_8 = arith.constant dense<0xFF800000> : vector<2x8xf32>
    %29 = vector.multi_reduction <maximumf>, %28, %cst_8 [2] : vector<2x8x32xf32> to vector<2x8xf32>
    %30 = vector.shape_cast %29 : vector<2x8xf32> to vector<2x8x1xf32>
    %31 = vector.broadcast %30 : vector<2x8x1xf32> to vector<2x8x32xf32>
    %32 = arith.subf %28, %31 : vector<2x8x32xf32>
    %33 = math.exp %32 : vector<2x8x32xf32>
    %34 = arith.truncf %33 : vector<2x8x32xf32> to vector<2x8x32xbf16>
    "tpu.trace_start"() <{level = 10 : i32, message = "bqn,bnd->bqd"}> : () -> ()
    %cst_9 = arith.constant dense<0.000000e+00> : vector<2x8x32xf32>
    %35 = tpu.matmul %34, %26, %cst_9 {dimension_numbers = #tpu.dot_dimension_numbers<[2], [1], [1], [2], [0, 0, 0, 1, 1, 2], [0], [0]>} : vector<2x8x32xbf16>, vector<2x32x32xbf16>, vector<2x8x32xf32> -> vector<2x8x32xf32>
    "tpu.trace_stop"() : () -> ()
    %36 = vector.shape_cast %34 : vector<2x8x32xbf16> to vector<16x32xbf16>
    %37 = arith.truncf %13 : vector<32x32xf32> to vector<32x32xbf16>
    %cst_10 = arith.constant dense<0.000000e+00> : vector<16x32xf32>
    %38 = tpu.matmul %36, %37, %cst_10 {dimension_numbers = #tpu.dot_dimension_numbers<[1], [0], [0], [1], [0, 0, 1, 1], [], []>} : vector<16x32xbf16>, vector<32x32xbf16>, vector<16x32xf32> -> vector<16x32xf32>
    %39 = vector.shape_cast %35 : vector<2x8x32xf32> to vector<16x32xf32>
    %40 = tpu.reciprocal %38 {approx = true} : vector<16x32xf32> -> vector<16x32xf32>
    %41 = arith.mulf %39, %40 : vector<16x32xf32>
    %42 = arith.truncf %41 : vector<16x32xf32> to vector<16x32xbf16>
    %c0_11 = arith.constant 0 : index
    %c0_12 = arith.constant 0 : index
    %43 = vector.load %arg3[%c0_11, %c0_12] : memref<32x32xbf16, #tpu.memory_space<vmem>>, vector<32x32xbf16>
    %cst_13 = arith.constant dense<0.000000e+00> : vector<16x32xf32>
    %44 = tpu.matmul %42, %43, %cst_13 {dimension_numbers = #tpu.dot_dimension_numbers<[1], [0], [0], [1], [0, 0, 1, 1], [], []>} : vector<16x32xbf16>, vector<32x32xbf16>, vector<16x32xf32> -> vector<16x32xf32>
    %c0_14 = arith.constant 0 : index
    %c0_15 = arith.constant 0 : index
    %45 = vector.load %arg4[%c0_14, %c0_15] : memref<1x32xf32, #tpu.memory_space<vmem>>, vector<1x32xf32>
    %46 = vector.broadcast %45 : vector<1x32xf32> to vector<16x32xf32>
    %47 = arith.addf %44, %46 : vector<16x32xf32>
    %48 = arith.addf %47, %0 : vector<16x32xf32>
    %49 = vector.shape_cast %48 : vector<16x32xf32> to vector<2x8x32xf32>
    %cst_16 = arith.constant dense<0.000000e+00> : vector<2x8xf32>
    %50 = vector.multi_reduction <add>, %49, %cst_16 [2] : vector<2x8x32xf32> to vector<2x8xf32>
    %51 = vector.shape_cast %50 : vector<2x8xf32> to vector<2x8x1xf32>
    %cst_17 = arith.constant dense<0.000000e+00> : vector<8x1xf32>
    %52 = vector.multi_reduction <add>, %51, %cst_17 [0] : vector<2x8x1xf32> to vector<8x1xf32>
    %53 = vector.shape_cast %52 : vector<8x1xf32> to vector<1x8x1xf32>
    %cst_18 = arith.constant 1.562500e-02 : f32
    %54 = vector.broadcast %cst_18 : f32 to vector<1x8x1xf32>
    %55 = arith.mulf %53, %54 : vector<1x8x1xf32>
    %56 = vector.broadcast %55 : vector<1x8x1xf32> to vector<2x8x32xf32>
    %57 = arith.subf %49, %56 : vector<2x8x32xf32>
    %58 = arith.mulf %57, %57 : vector<2x8x32xf32>
    %cst_19 = arith.constant dense<0.000000e+00> : vector<2x8xf32>
    %59 = vector.multi_reduction <add>, %58, %cst_19 [2] : vector<2x8x32xf32> to vector<2x8xf32>
    %60 = vector.shape_cast %59 : vector<2x8xf32> to vector<2x8x1xf32>
    %cst_20 = arith.constant dense<0.000000e+00> : vector<8x1xf32>
    %61 = vector.multi_reduction <add>, %60, %cst_20 [0] : vector<2x8x1xf32> to vector<8x1xf32>
    %62 = vector.shape_cast %61 : vector<8x1xf32> to vector<1x8x1xf32>
    %cst_21 = arith.constant 1.562500e-02 : f32
    %63 = vector.broadcast %cst_21 : f32 to vector<1x8x1xf32>
    %64 = arith.mulf %62, %63 : vector<1x8x1xf32>
    %cst_22 = arith.constant 9.99999974E-6 : f32
    %65 = vector.broadcast %cst_22 : f32 to vector<1x8x1xf32>
    %66 = arith.addf %64, %65 : vector<1x8x1xf32>
    %67 = math.rsqrt %66 : vector<1x8x1xf32>
    %c0_23 = arith.constant 0 : index
    %c0_24 = arith.constant 0 : index
    %c0_25 = arith.constant 0 : index
    %68 = vector.load %arg6[%c0_23, %c0_24, %c0_25] : memref<1x8x1xf32, #tpu.memory_space<vmem>>, vector<1x8x1xf32>
    %69 = arith.mulf %67, %68 : vector<1x8x1xf32>
    %70 = vector.broadcast %69 : vector<1x8x1xf32> to vector<2x8x32xf32>
    %71 = arith.mulf %57, %70 : vector<2x8x32xf32>
    %c0_26 = arith.constant 0 : index
    %c0_27 = arith.constant 0 : index
    %c0_28 = arith.constant 0 : index
    %72 = vector.load %arg7[%c0_26, %c0_27, %c0_28] : memref<1x8x1xf32, #tpu.memory_space<vmem>>, vector<1x8x1xf32>
    %73 = vector.broadcast %72 : vector<1x8x1xf32> to vector<2x8x32xf32>
    %74 = arith.addf %71, %73 : vector<2x8x32xf32>
    %75 = vector.shape_cast %74 : vector<2x8x32xf32> to vector<16x32xf32>
    %76 = arith.truncf %75 : vector<16x32xf32> to vector<16x32xbf16>
    %c0_29 = arith.constant 0 : index
    %c0_30 = arith.constant 0 : index
    %77 = vector.load %arg8[%c0_29, %c0_30] : memref<32x128xbf16, #tpu.memory_space<vmem>>, vector<32x128xbf16>
    %cst_31 = arith.constant dense<0.000000e+00> : vector<16x128xf32>
    %78 = tpu.matmul %76, %77, %cst_31 {dimension_numbers = #tpu.dot_dimension_numbers<[1], [0], [0], [1], [0, 0, 1, 1], [], []>} : vector<16x32xbf16>, vector<32x128xbf16>, vector<16x128xf32> -> vector<16x128xf32>
    %c0_32 = arith.constant 0 : index
    %c0_33 = arith.constant 0 : index
    %79 = vector.load %arg9[%c0_32, %c0_33] : memref<1x128xf32, #tpu.memory_space<vmem>>, vector<1x128xf32>
    %80 = vector.broadcast %79 : vector<1x128xf32> to vector<16x128xf32>
    %81 = arith.addf %78, %80 : vector<16x128xf32>
    %cst_34 = arith.constant 0.000000e+00 : f32
    %82 = vector.broadcast %cst_34 : f32 to vector<16x128xf32>
    %83 = arith.maximumf %81, %82 : vector<16x128xf32>
    %84 = arith.truncf %83 : vector<16x128xf32> to vector<16x128xbf16>
    %c0_35 = arith.constant 0 : index
    %c0_36 = arith.constant 0 : index
    %85 = vector.load %arg10[%c0_35, %c0_36] : memref<128x32xbf16, #tpu.memory_space<vmem>>, vector<128x32xbf16>
    %cst_37 = arith.constant dense<0.000000e+00> : vector<16x32xf32>
    %86 = tpu.matmul %84, %85, %cst_37 {dimension_numbers = #tpu.dot_dimension_numbers<[1], [0], [0], [1], [0, 0, 1, 1], [], []>} : vector<16x128xbf16>, vector<128x32xbf16>, vector<16x32xf32> -> vector<16x32xf32>
    %c0_38 = arith.constant 0 : index
    %c0_39 = arith.constant 0 : index
    %87 = vector.load %arg11[%c0_38, %c0_39] : memref<1x32xf32, #tpu.memory_space<vmem>>, vector<1x32xf32>
    %88 = vector.broadcast %87 : vector<1x32xf32> to vector<16x32xf32>
    %89 = arith.addf %86, %88 : vector<16x32xf32>
    %90 = arith.addf %89, %75 : vector<16x32xf32>
    %91 = arith.addf %90, %75 : vector<16x32xf32>
    %92 = vector.shape_cast %91 : vector<16x32xf32> to vector<2x8x32xf32>
    %cst_40 = arith.constant dense<0.000000e+00> : vector<2x8xf32>
    %93 = vector.multi_reduction <add>, %92, %cst_40 [2] : vector<2x8x32xf32> to vector<2x8xf32>
    %94 = vector.shape_cast %93 : vector<2x8xf32> to vector<2x8x1xf32>
    %cst_41 = arith.constant dense<0.000000e+00> : vector<8x1xf32>
    %95 = vector.multi_reduction <add>, %94, %cst_41 [0] : vector<2x8x1xf32> to vector<8x1xf32>
    %96 = vector.shape_cast %95 : vector<8x1xf32> to vector<1x8x1xf32>
    %cst_42 = arith.constant 1.562500e-02 : f32
    %97 = vector.broadcast %cst_42 : f32 to vector<1x8x1xf32>
    %98 = arith.mulf %96, %97 : vector<1x8x1xf32>
    %99 = vector.broadcast %98 : vector<1x8x1xf32> to vector<2x8x32xf32>
    %100 = arith.subf %92, %99 : vector<2x8x32xf32>
    %101 = arith.mulf %100, %100 : vector<2x8x32xf32>
    %cst_43 = arith.constant dense<0.000000e+00> : vector<2x8xf32>
    %102 = vector.multi_reduction <add>, %101, %cst_43 [2] : vector<2x8x32xf32> to vector<2x8xf32>
    %103 = vector.shape_cast %102 : vector<2x8xf32> to vector<2x8x1xf32>
    %cst_44 = arith.constant dense<0.000000e+00> : vector<8x1xf32>
    %104 = vector.multi_reduction <add>, %103, %cst_44 [0] : vector<2x8x1xf32> to vector<8x1xf32>
    %105 = vector.shape_cast %104 : vector<8x1xf32> to vector<1x8x1xf32>
    %cst_45 = arith.constant 1.562500e-02 : f32
    %106 = vector.broadcast %cst_45 : f32 to vector<1x8x1xf32>
    %107 = arith.mulf %105, %106 : vector<1x8x1xf32>
    %cst_46 = arith.constant 9.99999974E-6 : f32
    %108 = vector.broadcast %cst_46 : f32 to vector<1x8x1xf32>
    %109 = arith.addf %107, %108 : vector<1x8x1xf32>
    %110 = math.rsqrt %109 : vector<1x8x1xf32>
    %c0_47 = arith.constant 0 : index
    %c0_48 = arith.constant 0 : index
    %c0_49 = arith.constant 0 : index
    %111 = vector.load %arg12[%c0_47, %c0_48, %c0_49] : memref<1x8x1xf32, #tpu.memory_space<vmem>>, vector<1x8x1xf32>
    %112 = arith.mulf %110, %111 : vector<1x8x1xf32>
    %113 = vector.broadcast %112 : vector<1x8x1xf32> to vector<2x8x32xf32>
    %114 = arith.mulf %100, %113 : vector<2x8x32xf32>
    %c0_50 = arith.constant 0 : index
    %c0_51 = arith.constant 0 : index
    %c0_52 = arith.constant 0 : index
    %115 = vector.load %arg13[%c0_50, %c0_51, %c0_52] : memref<1x8x1xf32, #tpu.memory_space<vmem>>, vector<1x8x1xf32>
    %116 = vector.broadcast %115 : vector<1x8x1xf32> to vector<2x8x32xf32>
    %117 = arith.addf %114, %116 : vector<2x8x32xf32>
    %118 = vector.shape_cast %117 : vector<2x8x32xf32> to vector<2x256xf32>
    %c0_53 = arith.constant 0 : index
    %c0_54 = arith.constant 0 : index
    %119 = vector.load %arg14[%c0_53, %c0_54] : memref<2x256xf32, #tpu.memory_space<vmem>>, vector<2x256xf32>
    tpu.vector_store %arg14[%c0_53, %c0_54], %118 {strides = array<i32>} : memref<2x256xf32, #tpu.memory_space<vmem>>, vector<2x256xf32>,
    return
  }
}

</mosaic_0001>

<llo_original>
// kernel: _encoder_forward_impl.1
$region0: #{_encoder_forward_impl.1}
  #allocation0 [shape = 'u32[]', space=smem, size = 0x4, offset = 0x4, fixed_abs, tag = 'smem constant byte address 0x4 - core index']
  #allocation1 [shape = 'u32[144,128]{1,0:T(1,128)}', space=vmem, size = 0x12000, scoped, tag = 'internal scratch']
  %s0 = inlined_call_operand.vmem [shape: f32[16,32], index: 0, kind: input, shape index: {}]
  %s1 = inlined_call_operand.vmem [shape: bf16[32,96], index: 1, kind: input, shape index: {}]
  %s2 = inlined_call_operand.vmem [shape: f32[1,96], index: 2, kind: input, shape index: {}]
  %s3 = inlined_call_operand.vmem [shape: bf16[32,32], index: 3, kind: input, shape index: {}]
  %s4 = inlined_call_operand.vmem [shape: f32[1,32], index: 4, kind: input, shape index: {}]
  %s5 = inlined_call_operand.vmem [shape: f32[32,32], index: 5, kind: input, shape index: {}]
  %s6 = inlined_call_operand.vmem [shape: f32[1,8,1], index: 6, kind: input, shape index: {}]
  %s7 = inlined_call_operand.vmem [shape: f32[1,8,1], index: 7, kind: input, shape index: {}]
  %s8 = inlined_call_operand.vmem [shape: bf16[32,128], index: 8, kind: input, shape index: {}]
  %s9 = inlined_call_operand.vmem [shape: f32[1,128], index: 9, kind: input, shape index: {}]
  %s10 = inlined_call_operand.vmem [shape: bf16[128,32], index: 10, kind: input, shape index: {}]
  %s11 = inlined_call_operand.vmem [shape: f32[1,32], index: 11, kind: input, shape index: {}]
  %s12 = inlined_call_operand.vmem [shape: f32[1,8,1], index: 12, kind: input, shape index: {}]
  %s13 = inlined_call_operand.vmem [shape: f32[1,8,1], index: 13, kind: input, shape index: {}]
  %s14 = inlined_call_operand.vmem [shape: f32[2,256], index: 14, kind: output, shape index: {}]
  %s15 = sld [smem:[#allocation0]]
  $region66: #{_encoder_forward_impl.1} parent=0
    _
  %s17 = ssub.s32 1, %s15
  %s18 = scalar_select 0, %s17, %s15
  // Predicated region
  $region2: #{_encoder_forward_impl.1} parent=0 // pred_check
    _
  $region3: #{_encoder_forward_impl.1} parent=0 // pred_check_branch
    %20 = sbr.rel (0) target = $region5
  $region4: #{_encoder_forward_impl.1} parent=0 // pred_region
    _
  $region5: #{_encoder_forward_impl.1} parent=0 // pred_fallthru
    _
  // Predicated region
  $region6: #{_encoder_forward_impl.1} parent=0 // pred_check
    _
  $region7: #{_encoder_forward_impl.1} parent=0 // pred_check_branch
    %22 = sbr.rel (0) target = $region9
  $region8: #{_encoder_forward_impl.1} parent=0 // pred_region
    _
  $region9: #{_encoder_forward_impl.1} parent=0 // pred_fallthru
    _
  // Predicated region
  $region10: #{_encoder_forward_impl.1} parent=0 // pred_check
    _
  $region11: #{_encoder_forward_impl.1} parent=0 // pred_check_branch
    %24 = sbr.rel (0) target = $region13
  $region12: #{_encoder_forward_impl.1} parent=0 // pred_region
    _
  $region13: #{_encoder_forward_impl.1} parent=0 // pred_fallthru
    _
  // Predicated region
  $region14: #{_encoder_forward_impl.1} parent=0 // pred_check
    _
  $region15: #{_encoder_forward_impl.1} parent=0 // pred_check_branch
    %26 = sbr.rel (0) target = $region17
  $region16: #{_encoder_forward_impl.1} parent=0 // pred_region
    _
  $region17: #{_encoder_forward_impl.1} parent=0 // pred_fallthru
    _
  // Predicated region
  $region18: #{_encoder_forward_impl.1} parent=0 // pred_check
    _
  $region19: #{_encoder_forward_impl.1} parent=0 // pred_check_branch
    %28 = sbr.rel (0) target = $region21
  $region20: #{_encoder_forward_impl.1} parent=0 // pred_region
    _
  $region21: #{_encoder_forward_impl.1} parent=0 // pred_fallthru
    _
  // Predicated region
  $region22: #{_encoder_forward_impl.1} parent=0 // pred_check
    _
  $region23: #{_encoder_forward_impl.1} parent=0 // pred_check_branch
    %30 = sbr.rel (0) target = $region25
  $region24: #{_encoder_forward_impl.1} parent=0 // pred_region
    _
  $region25: #{_encoder_forward_impl.1} parent=0 // pred_fallthru
    _
  // Predicated region
  $region26: #{_encoder_forward_impl.1} parent=0 // pred_check
    _
  $region27: #{_encoder_forward_impl.1} parent=0 // pred_check_branch
    %32 = sbr.rel (0) target = $region29
  $region28: #{_encoder_forward_impl.1} parent=0 // pred_region
    _
  $region29: #{_encoder_forward_impl.1} parent=0 // pred_fallthru
    _
  // Predicated region
  $region30: #{_encoder_forward_impl.1} parent=0 // pred_check
    _
  $region31: #{_encoder_forward_impl.1} parent=0 // pred_check_branch
    %34 = sbr.rel (0) target = $region33
  $region32: #{_encoder_forward_impl.1} parent=0 // pred_region
    _
  $region33: #{_encoder_forward_impl.1} parent=0 // pred_fallthru
    _
  // Predicated region
  $region34: #{_encoder_forward_impl.1} parent=0 // pred_check
    _
  $region35: #{_encoder_forward_impl.1} parent=0 // pred_check_branch
    %36 = sbr.rel (0) target = $region37
  $region36: #{_encoder_forward_impl.1} parent=0 // pred_region
    _
  $region37: #{_encoder_forward_impl.1} parent=0 // pred_fallthru
    _
  // Predicated region
  $region38: #{_encoder_forward_impl.1} parent=0 // pred_check
    _
  $region39: #{_encoder_forward_impl.1} parent=0 // pred_check_branch
    %38 = sbr.rel (0) target = $region41
  $region40: #{_encoder_forward_impl.1} parent=0 // pred_region
    _
  $region41: #{_encoder_forward_impl.1} parent=0 // pred_fallthru
    _
  // Predicated region
  $region42: #{_encoder_forward_impl.1} parent=0 // pred_check
    _
  $region43: #{_encoder_forward_impl.1} parent=0 // pred_check_branch
    %40 = sbr.rel (0) target = $region45
  $region44: #{_encoder_forward_impl.1} parent=0 // pred_region
    _
  $region45: #{_encoder_forward_impl.1} parent=0 // pred_fallthru
    _
  // Predicated region
  $region46: #{_encoder_forward_impl.1} parent=0 // pred_check
    _
  $region47: #{_encoder_forward_impl.1} parent=0 // pred_check_branch
    %42 = sbr.rel (0) target = $region49
  $region48: #{_encoder_forward_impl.1} parent=0 // pred_region
    _
  $region49: #{_encoder_forward_impl.1} parent=0 // pred_fallthru
    _
  // Predicated region
  $region50: #{_encoder_forward_impl.1} parent=0 // pred_check
    _
  $region51: #{_encoder_forward_impl.1} parent=0 // pred_check_branch
    %44 = sbr.rel (0) target = $region53
  $region52: #{_encoder_forward_impl.1} parent=0 // pred_region
    _
  $region53: #{_encoder_forward_impl.1} parent=0 // pred_fallthru
    _
  // Predicated region
  $region54: #{_encoder_forward_impl.1} parent=0 // pred_check
    _
  $region55: #{_encoder_forward_impl.1} parent=0 // pred_check_branch
    %46 = sbr.rel (0) target = $region57
  $region56: #{_encoder_forward_impl.1} parent=0 // pred_region
    _
  $region57: #{_encoder_forward_impl.1} parent=0 // pred_fallthru
    _
  %v48 = vld [vmem:[%s0] sm:$0xff]
  %v49 = vld [vmem:[%s0 + $0x8] sm:$0xff]
  %v50 = vpack.c.bf16 %v49, %v48
  %v51 = vld [vmem:[%s1] sm:$0xf]
  %v52 = vld [vmem:[%s1 + $0x4] sm:$0xf]
  %v53 = vld [vmem:[%s1 + $0x8] sm:$0xf]
  %v54 = vld [vmem:[%s1 + $0xc] sm:$0xf]
  %v55 = vld [vmem:[%s2] sm:$0x1]
  %v57 = vlaneseq
  %v58 = vshrl.u32 %v57, 7
  %v59 = vsub.s32 0, %v58
  %v60 = vrot.slane %v55, %v59
  %v66 = vunpack.c.l.b16 %v51
  %v67 = vunpack.c.l.b16 %v52
  %v68 = vunpack.c.l.b16 %v53
  %v69 = vunpack.c.l.b16 %v54
  %v70 = vpack.c.b16 %v67, %v66
  %v71 = vpack.c.b16 %v69, %v68
  %vm74 = vcmask 261120
  %v76 = vsel %vm74, %v50, 0
  %78 = vmatprep.subr.bf16.mxu0 0
  %79 = vmatpush1.bf16.msra.mxu0 %v70
  %80 = vmatprep.subr.bf16.mxu0 0
  %81 = vmatpush1.bf16.msra.mxu0 %v71
  %82 = vmatprep.subr.bf16.mxu0 0
  %83 = vmatpush1.bf16.msra.mxu0 0
  %84 = vmatprep.subr.bf16.mxu0 0
  %85 = vmatpush1.bf16.msra.mxu0 0
  %86 = vmatprep.subr.bf16.mxu0 0
  %87 = vmatpush1.bf16.msra.mxu0 0
  %88 = vmatprep.subr.bf16.mxu0 0
  %89 = vmatpush1.bf16.msra.mxu0 0
  %90 = vmatprep.subr.bf16.mxu0 0
  %91 = vmatpush1.bf16.msra.mxu0 0
  %92 = vmatprep.subr.bf16.mxu0 0
  %93 = vmatpush1.bf16.msra.mxu0 0
  %94 = vmatprep.subr.bf16.mxu0 0
  %95 = vmatpush1.bf16.msra.mxu0 0
  %96 = vmatprep.subr.bf16.mxu0 0
  %97 = vmatpush1.bf16.msra.mxu0 0
  %98 = vmatprep.subr.bf16.mxu0 0
  %99 = vmatpush1.bf16.msra.mxu0 0
  %100 = vmatprep.subr.bf16.mxu0 0
  %101 = vmatpush1.bf16.msra.mxu0 0
  %102 = vmatprep.subr.bf16.mxu0 0
  %103 = vmatpush1.bf16.msra.mxu0 0
  %104 = vmatprep.subr.bf16.mxu0 0
  %105 = vmatpush1.bf16.msra.mxu0 0
  %106 = vmatprep.subr.bf16.mxu0 0
  %107 = vmatpush1.bf16.msra.mxu0 0
  %108 = vmatprep.subr.bf16.mxu0 0
  %109 = vmatpush1.bf16.msra.mxu0 0
  %110 = vmatprep.mubr.bf16.mxu0 0
  %111 = vmatmul.mubr.bf16.gmra.mrb[0].mxu0 %v76
  %v112 = vpop.f32.mrb[0].mxu0
  %v113 = vadd.f32 %v60, %v112
  %v114 = vpop.f32.mrb[0].mxu0
  %v115 = vpop.f32.mrb[0].mxu0
  %v116 = vadd.f32 %v60, %v115
  %v117 = vpop.f32.mrb[0].mxu0
  %118 = vdwg.mxu0
  %v119 = vld [vmem:[%s5] sm:$0xff]
  %v120 = vld [vmem:[%s5 + $0x8] sm:$0xff]
  %v121 = vld [vmem:[%s5 + $0x10] sm:$0xff]
  %v122 = vld [vmem:[%s5 + $0x18] sm:$0xff]
  %127 = vrot.lane.b32.xlu0 %v119, 32
  %v128 = vpop.permute.xlu0 %127
  %129 = vrot.lane.b32.xlu0 %v120, 32
  %v130 = vpop.permute.xlu0 %129
  %131 = vrot.lane.b32.xlu0 %v121, 32
  %v132 = vpop.permute.xlu0 %131
  %133 = vrot.lane.b32.xlu0 %v122, 32
  %v134 = vpop.permute.xlu0 %133
  %v139 = vmul.f32 %v113, %v128
  %v140 = vmul.f32 %v113, %v130
  %v141 = vmul.f32 %v113, %v132
  %v142 = vmul.f32 %v113, %v134
  %v143 = vmul.f32 %v116, %v128
  %v144 = vmul.f32 %v116, %v130
  %v145 = vmul.f32 %v116, %v132
  %v146 = vmul.f32 %v116, %v134
  %v147 = vpack.c.bf16 %v140, %v139
  %v148 = vpack.c.bf16 %v142, %v141
  %v149 = vpack.c.bf16 %v144, %v143
  %v150 = vpack.c.bf16 %v146, %v145
  %151 = vrot.lane.b32.xlu0 %v119, 64
  %v152 = vpop.permute.xlu0 %151
  %153 = vrot.lane.b32.xlu0 %v120, 64
  %v154 = vpop.permute.xlu0 %153
  %155 = vrot.lane.b32.xlu0 %v121, 64
  %v156 = vpop.permute.xlu0 %155
  %157 = vrot.lane.b32.xlu0 %v122, 64
  %v158 = vpop.permute.xlu0 %157
  %v163 = vmul.f32 %v113, %v152
  %v164 = vmul.f32 %v113, %v154
  %v165 = vmul.f32 %v113, %v156
  %v166 = vmul.f32 %v113, %v158
  %v167 = vmul.f32 %v116, %v152
  %v168 = vmul.f32 %v116, %v154
  %v169 = vmul.f32 %v116, %v156
  %v170 = vmul.f32 %v116, %v158
  %v171 = vpack.c.bf16 %v164, %v163
  %v172 = vpack.c.bf16 %v166, %v165
  %v173 = vpack.c.bf16 %v168, %v167
  %v174 = vpack.c.bf16 %v170, %v169
  %v175 = vpack.c.bf16 %v113, %v113
  %v176 = vpack.c.bf16 %v116, %v116
  %179 = vrot.lane.b32.xlu0 %v147, 96
  %v180 = vpop.permute.xlu0 %179
  %181 = vrot.lane.b32.xlu0 %v148, 96
  %v182 = vpop.permute.xlu0 %181
  %v184 = vsel %vm74, %v175, 0
  %v187 = vsel %vm74, %v180, 0
  %v190 = vsel %vm74, %v182, 0
  %192 = vmatprep.subr.bf16.mxu0 0
  %193 = vmatpush1.bf16.xpose.msra.mxu0 %v187
  %194 = vmatprep.subr.bf16.mxu0 0
  %195 = vmatpush1.bf16.xpose.msra.mxu0 %v190
  %196 = vmatprep.subr.bf16.mxu0 0
  %197 = vmatpush1.bf16.xpose.msra.mxu0 0
  %198 = vmatprep.subr.bf16.mxu0 0
  %199 = vmatpush1.bf16.xpose.msra.mxu0 0
  %200 = vmatprep.subr.bf16.mxu0 0
  %201 = vmatpush1.bf16.xpose.msra.mxu0 0
  %202 = vmatprep.subr.bf16.mxu0 0
  %203 = vmatpush1.bf16.xpose.msra.mxu0 0
  %204 = vmatprep.subr.bf16.mxu0 0
  %205 = vmatpush1.bf16.xpose.msra.mxu0 0
  %206 = vmatprep.subr.bf16.mxu0 0
  %207 = vmatpush1.bf16.xpose.msra.mxu0 0
  %208 = vmatprep.subr.bf16.mxu0 0
  %209 = vmatpush1.bf16.xpose.msra.mxu0 0
  %210 = vmatprep.subr.bf16.mxu0 0
  %211 = vmatpush1.bf16.xpose.msra.mxu0 0
  %212 = vmatprep.subr.bf16.mxu0 0
  %213 = vmatpush1.bf16.xpose.msra.mxu0 0
  %214 = vmatprep.subr.bf16.mxu0 0
  %215 = vmatpush1.bf16.xpose.msra.mxu0 0
  %216 = vmatprep.subr.bf16.mxu0 0
  %217 = vmatpush1.bf16.xpose.msra.mxu0 0
  %218 = vmatprep.subr.bf16.mxu0 0
  %219 = vmatpush1.bf16.xpose.msra.mxu0 0
  %220 = vmatprep.subr.bf16.mxu0 0
  %221 = vmatpush1.bf16.xpose.msra.mxu0 0
  %222 = vmatprep.subr.bf16.mxu0 0
  %223 = vmatpush1.bf16.xpose.msra.mxu0 0
  %224 = vmatprep.mubr.bf16.mxu0 0
  %225 = vmatmul.mubr.bf16.gmra.mrb[0].mxu0 %v184
  %v226 = vpop.f32.mrb[0].mxu0
  %v227 = vadd.f32 0.0, %v226
  %v228 = vpop.f32.mrb[0].mxu0
  %v229 = vpop.f32.mrb[0].mxu0
  %v230 = vpop.f32.mrb[0].mxu0
  %231 = vdwg.mxu0
  %234 = vrot.lane.b32.xlu0 %v149, 96
  %v235 = vpop.permute.xlu0 %234
  %236 = vrot.lane.b32.xlu0 %v150, 96
  %v237 = vpop.permute.xlu0 %236
  %v239 = vsel %vm74, %v176, 0
  %v242 = vsel %vm74, %v235, 0
  %v245 = vsel %vm74, %v237, 0
  %247 = vmatprep.subr.bf16.mxu0 0
  %248 = vmatpush1.bf16.xpose.msra.mxu0 %v242
  %249 = vmatprep.subr.bf16.mxu0 0
  %250 = vmatpush1.bf16.xpose.msra.mxu0 %v245
  %251 = vmatprep.subr.bf16.mxu0 0
  %252 = vmatpush1.bf16.xpose.msra.mxu0 0
  %253 = vmatprep.subr.bf16.mxu0 0
  %254 = vmatpush1.bf16.xpose.msra.mxu0 0
  %255 = vmatprep.subr.bf16.mxu0 0
  %256 = vmatpush1.bf16.xpose.msra.mxu0 0
  %257 = vmatprep.subr.bf16.mxu0 0
  %258 = vmatpush1.bf16.xpose.msra.mxu0 0
  %259 = vmatprep.subr.bf16.mxu0 0
  %260 = vmatpush1.bf16.xpose.msra.mxu0 0
  %261 = vmatprep.subr.bf16.mxu0 0
  %262 = vmatpush1.bf16.xpose.msra.mxu0 0
  %263 = vmatprep.subr.bf16.mxu0 0
  %264 = vmatpush1.bf16.xpose.msra.mxu0 0
  %265 = vmatprep.subr.bf16.mxu0 0
  %266 = vmatpush1.bf16.xpose.msra.mxu0 0
  %267 = vmatprep.subr.bf16.mxu0 0
  %268 = vmatpush1.bf16.xpose.msra.mxu0 0
  %269 = vmatprep.subr.bf16.mxu0 0
  %270 = vmatpush1.bf16.xpose.msra.mxu0 0
  %271 = vmatprep.subr.bf16.mxu0 0
  %272 = vmatpush1.bf16.xpose.msra.mxu0 0
  %273 = vmatprep.subr.bf16.mxu0 0
  %274 = vmatpush1.bf16.xpose.msra.mxu0 0
  %275 = vmatprep.subr.bf16.mxu0 0
  %276 = vmatpush1.bf16.xpose.msra.mxu0 0
  %277 = vmatprep.subr.bf16.mxu0 0
  %278 = vmatpush1.bf16.xpose.msra.mxu0 0
  %279 = vmatprep.mubr.bf16.mxu0 0
  %280 = vmatmul.mubr.bf16.gmra.mrb[0].mxu0 %v239
  %v281 = vpop.f32.mrb[0].mxu0
  %v282 = vadd.f32 0.0, %v281
  %v283 = vpop.f32.mrb[0].mxu0
  %v284 = vpop.f32.mrb[0].mxu0
  %v285 = vpop.f32.mrb[0].mxu0
  %286 = vdwg.mxu0
  %v287 = vsel %vm74, %v227, -inf
  %288 = vmax.xlane.f32.xlu0 %v287
  %v289 = vpop.xlane.xlu0 %288
  %v290 = vsel %vm74, %v282, -inf
  %291 = vmax.xlane.f32.xlu0 %v290
  %v292 = vpop.xlane.xlu0 %291
  %v293 = vsub.f32 %v227, %v289
  %v294 = vsub.f32 %v282, %v292
  %v295 = vmul.f32 %v293, 1.442695
  %v296 = vpow.pop %v295
  %v297 = vmul.f32 %v294, 1.442695
  %v298 = vpow.pop %v297
  %v299 = vpack.c.bf16 %v296, %v296
  %v300 = vpack.c.bf16 %v298, %v298
  %303 = vrot.lane.b32.xlu0 %v171, 64
  %v304 = vpop.permute.xlu0 %303
  %305 = vrot.lane.b32.xlu0 %v172, 64
  %v306 = vpop.permute.xlu0 %305
  %v310 = vsel %vm74, %v299, 0
  %312 = vmatprep.subr.bf16.mxu0 0
  %313 = vmatpush1.bf16.msra.mxu0 %v304
  %314 = vmatprep.subr.bf16.mxu0 0
  %315 = vmatpush1.bf16.msra.mxu0 %v306
  %316 = vmatprep.subr.bf16.mxu0 0
  %317 = vmatpush1.bf16.msra.mxu0 0
  %318 = vmatprep.subr.bf16.mxu0 0
  %319 = vmatpush1.bf16.msra.mxu0 0
  %320 = vmatprep.subr.bf16.mxu0 0
  %321 = vmatpush1.bf16.msra.mxu0 0
  %322 = vmatprep.subr.bf16.mxu0 0
  %323 = vmatpush1.bf16.msra.mxu0 0
  %324 = vmatprep.subr.bf16.mxu0 0
  %325 = vmatpush1.bf16.msra.mxu0 0
  %326 = vmatprep.subr.bf16.mxu0 0
  %327 = vmatpush1.bf16.msra.mxu0 0
  %328 = vmatprep.subr.bf16.mxu0 0
  %329 = vmatpush1.bf16.msra.mxu0 0
  %330 = vmatprep.subr.bf16.mxu0 0
  %331 = vmatpush1.bf16.msra.mxu0 0
  %332 = vmatprep.subr.bf16.mxu0 0
  %333 = vmatpush1.bf16.msra.mxu0 0
  %334 = vmatprep.subr.bf16.mxu0 0
  %335 = vmatpush1.bf16.msra.mxu0 0
  %336 = vmatprep.subr.bf16.mxu0 0
  %337 = vmatpush1.bf16.msra.mxu0 0
  %338 = vmatprep.subr.bf16.mxu0 0
  %339 = vmatpush1.bf16.msra.mxu0 0
  %340 = vmatprep.subr.bf16.mxu0 0
  %341 = vmatpush1.bf16.msra.mxu0 0
  %342 = vmatprep.subr.bf16.mxu0 0
  %343 = vmatpush1.bf16.msra.mxu0 0
  %344 = vmatprep.mubr.bf16.mxu0 0
  %345 = vmatmul.mubr.bf16.gmra.mrb[0].mxu0 %v310
  %v346 = vpop.f32.mrb[0].mxu0
  %v347 = vadd.f32 0.0, %v346
  %v348 = vpop.f32.mrb[0].mxu0
  %v349 = vpop.f32.mrb[0].mxu0
  %v350 = vpop.f32.mrb[0].mxu0
  %351 = vdwg.mxu0
  %354 = vrot.lane.b32.xlu0 %v173, 64
  %v355 = vpop.permute.xlu0 %354
  %356 = vrot.lane.b32.xlu0 %v174, 64
  %v357 = vpop.permute.xlu0 %356
  %v361 = vsel %vm74, %v300, 0
  %363 = vmatprep.subr.bf16.mxu0 0
  %364 = vmatpush1.bf16.msra.mxu0 %v355
  %365 = vmatprep.subr.bf16.mxu0 0
  %366 = vmatpush1.bf16.msra.mxu0 %v357
  %367 = vmatprep.subr.bf16.mxu0 0
  %368 = vmatpush1.bf16.msra.mxu0 0
  %369 = vmatprep.subr.bf16.mxu0 0
  %370 = vmatpush1.bf16.msra.mxu0 0
  %371 = vmatprep.subr.bf16.mxu0 0
  %372 = vmatpush1.bf16.msra.mxu0 0
  %373 = vmatprep.subr.bf16.mxu0 0
  %374 = vmatpush1.bf16.msra.mxu0 0
  %375 = vmatprep.subr.bf16.mxu0 0
  %376 = vmatpush1.bf16.msra.mxu0 0
  %377 = vmatprep.subr.bf16.mxu0 0
  %378 = vmatpush1.bf16.msra.mxu0 0
  %379 = vmatprep.subr.bf16.mxu0 0
  %380 = vmatpush1.bf16.msra.mxu0 0
  %381 = vmatprep.subr.bf16.mxu0 0
  %382 = vmatpush1.bf16.msra.mxu0 0
  %383 = vmatprep.subr.bf16.mxu0 0
  %384 = vmatpush1.bf16.msra.mxu0 0
  %385 = vmatprep.subr.bf16.mxu0 0
  %386 = vmatpush1.bf16.msra.mxu0 0
  %387 = vmatprep.subr.bf16.mxu0 0
  %388 = vmatpush1.bf16.msra.mxu0 0
  %389 = vmatprep.subr.bf16.mxu0 0
  %390 = vmatpush1.bf16.msra.mxu0 0
  %391 = vmatprep.subr.bf16.mxu0 0
  %392 = vmatpush1.bf16.msra.mxu0 0
  %393 = vmatprep.subr.bf16.mxu0 0
  %394 = vmatpush1.bf16.msra.mxu0 0
  %395 = vmatprep.mubr.bf16.mxu0 0
  %396 = vmatmul.mubr.bf16.gmra.mrb[0].mxu0 %v361
  %v397 = vpop.f32.mrb[0].mxu0
  %v398 = vadd.f32 0.0, %v397
  %v399 = vpop.f32.mrb[0].mxu0
  %v400 = vpop.f32.mrb[0].mxu0
  %v401 = vpop.f32.mrb[0].mxu0
  %402 = vdwg.mxu0
  %v403 = vpack.c.bf16 %v120, %v119
  %v404 = vpack.c.bf16 %v122, %v121
  %v407 = vunpack.c.l.b16 %v299
  %v408 = vunpack.c.l.b16 %v300
  %v409 = vpack.c.b16 %v408, %v407
  %v411 = vsel %vm74, %v409, 0
  %413 = vmatprep.subr.bf16.mxu0 0
  %414 = vmatpush1.bf16.msra.mxu0 %v403
  %415 = vmatprep.subr.bf16.mxu0 0
  %416 = vmatpush1.bf16.msra.mxu0 %v404
  %417 = vmatprep.subr.bf16.mxu0 0
  %418 = vmatpush1.bf16.msra.mxu0 0
  %419 = vmatprep.subr.bf16.mxu0 0
  %420 = vmatpush1.bf16.msra.mxu0 0
  %421 = vmatprep.subr.bf16.mxu0 0
  %422 = vmatpush1.bf16.msra.mxu0 0
  %423 = vmatprep.subr.bf16.mxu0 0
  %424 = vmatpush1.bf16.msra.mxu0 0
  %425 = vmatprep.subr.bf16.mxu0 0
  %426 = vmatpush1.bf16.msra.mxu0 0
  %427 = vmatprep.subr.bf16.mxu0 0
  %428 = vmatpush1.bf16.msra.mxu0 0
  %429 = vmatprep.subr.bf16.mxu0 0
  %430 = vmatpush1.bf16.msra.mxu0 0
  %431 = vmatprep.subr.bf16.mxu0 0
  %432 = vmatpush1.bf16.msra.mxu0 0
  %433 = vmatprep.subr.bf16.mxu0 0
  %434 = vmatpush1.bf16.msra.mxu0 0
  %435 = vmatprep.subr.bf16.mxu0 0
  %436 = vmatpush1.bf16.msra.mxu0 0
  %437 = vmatprep.subr.bf16.mxu0 0
  %438 = vmatpush1.bf16.msra.mxu0 0
  %439 = vmatprep.subr.bf16.mxu0 0
  %440 = vmatpush1.bf16.msra.mxu0 0
  %441 = vmatprep.subr.bf16.mxu0 0
  %442 = vmatpush1.bf16.msra.mxu0 0
  %443 = vmatprep.subr.bf16.mxu0 0
  %444 = vmatpush1.bf16.msra.mxu0 0
  %445 = vmatprep.mubr.bf16.mxu0 0
  %446 = vmatmul.mubr.bf16.gmra.mrb[0].mxu0 %v411
  %v447 = vpop.f32.mrb[0].mxu0
  %v448 = vadd.f32 0.0, %v447
  %v449 = vpop.f32.mrb[0].mxu0
  %v450 = vpop.f32.mrb[0].mxu0
  %v451 = vadd.f32 0.0, %v450
  %v452 = vpop.f32.mrb[0].mxu0
  %453 = vdwg.mxu0
  %v454 = vrcp.pop %v448
  %v455 = vrcp.pop %v451
  %v456 = vmul.f32 %v347, %v454
  %v457 = vmul.f32 %v398, %v455
  %v458 = vpack.c.bf16 %v457, %v456
  %v459 = vld [vmem:[%s3] sm:$0xf]
  %v460 = vld [vmem:[%s3 + $0x4] sm:$0xf]
  %v461 = vld [vmem:[%s3 + $0x8] sm:$0xf]
  %v462 = vld [vmem:[%s3 + $0xc] sm:$0xf]
  %v463 = vld [vmem:[%s4] sm:$0x1]
  %v465 = vlaneseq
  %v466 = vshrl.u32 %v465, 7
  %v467 = vsub.s32 0, %v466
  %v468 = vrot.slane %v463, %v467
  %v474 = vunpack.c.l.b16 %v459
  %v475 = vunpack.c.l.b16 %v460
  %v476 = vunpack.c.l.b16 %v461
  %v477 = vunpack.c.l.b16 %v462
  %v478 = vpack.c.b16 %v475, %v474
  %v479 = vpack.c.b16 %v477, %v476
  %v483 = vsel %vm74, %v458, 0
  %485 = vmatprep.subr.bf16.mxu0 0
  %486 = vmatpush1.bf16.msra.mxu0 %v478
  %487 = vmatprep.subr.bf16.mxu0 0
  %488 = vmatpush1.bf16.msra.mxu0 %v479
  %489 = vmatprep.subr.bf16.mxu0 0
  %490 = vmatpush1.bf16.msra.mxu0 0
  %491 = vmatprep.subr.bf16.mxu0 0
  %492 = vmatpush1.bf16.msra.mxu0 0
  %493 = vmatprep.subr.bf16.mxu0 0
  %494 = vmatpush1.bf16.msra.mxu0 0
  %495 = vmatprep.subr.bf16.mxu0 0
  %496 = vmatpush1.bf16.msra.mxu0 0
  %497 = vmatprep.subr.bf16.mxu0 0
  %498 = vmatpush1.bf16.msra.mxu0 0
  %499 = vmatprep.subr.bf16.mxu0 0
  %500 = vmatpush1.bf16.msra.mxu0 0
  %501 = vmatprep.subr.bf16.mxu0 0
  %502 = vmatpush1.bf16.msra.mxu0 0
  %503 = vmatprep.subr.bf16.mxu0 0
  %504 = vmatpush1.bf16.msra.mxu0 0
  %505 = vmatprep.subr.bf16.mxu0 0
  %506 = vmatpush1.bf16.msra.mxu0 0
  %507 = vmatprep.subr.bf16.mxu0 0
  %508 = vmatpush1.bf16.msra.mxu0 0
  %509 = vmatprep.subr.bf16.mxu0 0
  %510 = vmatpush1.bf16.msra.mxu0 0
  %511 = vmatprep.subr.bf16.mxu0 0
  %512 = vmatpush1.bf16.msra.mxu0 0
  %513 = vmatprep.subr.bf16.mxu0 0
  %514 = vmatpush1.bf16.msra.mxu0 0
  %515 = vmatprep.subr.bf16.mxu0 0
  %516 = vmatpush1.bf16.msra.mxu0 0
  %517 = vmatprep.mubr.bf16.mxu0 0
  %518 = vmatmul.mubr.bf16.gmra.mrb[0].mxu0 %v483
  %v519 = vpop.f32.mrb[0].mxu0
  %v520 = vadd.f32 %v468, %v519
  %v521 = vpop.f32.mrb[0].mxu0
  %v522 = vpop.f32.mrb[0].mxu0
  %v523 = vadd.f32 %v468, %v522
  %v524 = vpop.f32.mrb[0].mxu0
  %525 = vdwg.mxu0
  %v526 = vadd.f32 %v520, %v48
  %v527 = vadd.f32 %v523, %v49
  %v528 = vsel %vm74, %v526, 0.0
  %529 = vadd.xlane.f32.xlu0 %v528
  %v530 = vpop.xlane.xlu0 %529
  %v531 = vsel %vm74, %v527, 0.0
  %532 = vadd.xlane.f32.xlu0 %v531
  %v533 = vpop.xlane.xlu0 %532
  %v534 = vadd.f32 %v530, %v533
  %v535 = vmul.f32 %v534, 0.015625
  %v536 = vsub.f32 %v526, %v535
  %v537 = vsub.f32 %v527, %v535
  %v538 = vmul.f32 %v536, %v536
  %v539 = vmul.f32 %v537, %v537
  %v540 = vsel %vm74, %v538, 0.0
  %541 = vadd.xlane.f32.xlu0 %v540
  %v542 = vpop.xlane.xlu0 %541
  %v543 = vsel %vm74, %v539, 0.0
  %544 = vadd.xlane.f32.xlu0 %v543
  %v545 = vpop.xlane.xlu0 %544
  %v546 = vadd.f32 %v542, %v545
  %v547 = vmul.f32 %v546, 0.015625
  %v548 = vadd.f32 %v547, 1e-05
  %v549 = vrsqrt.pop %v548
  %v550 = vld [vmem:[%s6] sm:$0xff]
  %v551 = vmul.f32 %v549, %v550
  %553 = vset.pattern.permute.xlu0 0
  %554 = vperm.xlu0 %553, %v551
  %v555 = vpop.permute.xlu0 %554
  %v557 = vmul.f32 %v536, %v555
  %v558 = vmul.f32 %v537, %v555
  %v559 = vld [vmem:[%s7] sm:$0xff]
  %561 = vset.pattern.permute.xlu0 0
  %562 = vperm.xlu0 %561, %v559
  %v563 = vpop.permute.xlu0 %562
  %v565 = vadd.f32 %v557, %v563
  %v566 = vadd.f32 %v558, %v563
  %v567 = vpack.c.bf16 %v566, %v565
  %v568 = vld [vmem:[%s8] sm:$0xf]
  %v569 = vld [vmem:[%s8 + $0x4] sm:$0xf]
  %v570 = vld [vmem:[%s8 + $0x8] sm:$0xf]
  %v571 = vld [vmem:[%s8 + $0xc] sm:$0xf]
  %v572 = vld [vmem:[%s9] sm:$0x1]
  %v574 = vlaneseq
  %v575 = vshrl.u32 %v574, 7
  %v576 = vsub.s32 0, %v575
  %v577 = vrot.slane %v572, %v576
  %v583 = vunpack.c.l.b16 %v568
  %v584 = vunpack.c.l.b16 %v569
  %v585 = vunpack.c.l.b16 %v570
  %v586 = vunpack.c.l.b16 %v571
  %v587 = vpack.c.b16 %v584, %v583
  %v588 = vpack.c.b16 %v586, %v585
  %v592 = vsel %vm74, %v567, 0
  %594 = vmatprep.subr.bf16.mxu0 0
  %595 = vmatpush1.bf16.msra.mxu0 %v587
  %596 = vmatprep.subr.bf16.mxu0 0
  %597 = vmatpush1.bf16.msra.mxu0 %v588
  %598 = vmatprep.subr.bf16.mxu0 0
  %599 = vmatpush1.bf16.msra.mxu0 0
  %600 = vmatprep.subr.bf16.mxu0 0
  %601 = vmatpush1.bf16.msra.mxu0 0
  %602 = vmatprep.subr.bf16.mxu0 0
  %603 = vmatpush1.bf16.msra.mxu0 0
  %604 = vmatprep.subr.bf16.mxu0 0
  %605 = vmatpush1.bf16.msra.mxu0 0
  %606 = vmatprep.subr.bf16.mxu0 0
  %607 = vmatpush1.bf16.msra.mxu0 0
  %608 = vmatprep.subr.bf16.mxu0 0
  %609 = vmatpush1.bf16.msra.mxu0 0
  %610 = vmatprep.subr.bf16.mxu0 0
  %611 = vmatpush1.bf16.msra.mxu0 0
  %612 = vmatprep.subr.bf16.mxu0 0
  %613 = vmatpush1.bf16.msra.mxu0 0
  %614 = vmatprep.subr.bf16.mxu0 0
  %615 = vmatpush1.bf16.msra.mxu0 0
  %616 = vmatprep.subr.bf16.mxu0 0
  %617 = vmatpush1.bf16.msra.mxu0 0
  %618 = vmatprep.subr.bf16.mxu0 0
  %619 = vmatpush1.bf16.msra.mxu0 0
  %620 = vmatprep.subr.bf16.mxu0 0
  %621 = vmatpush1.bf16.msra.mxu0 0
  %622 = vmatprep.subr.bf16.mxu0 0
  %623 = vmatpush1.bf16.msra.mxu0 0
  %624 = vmatprep.subr.bf16.mxu0 0
  %625 = vmatpush1.bf16.msra.mxu0 0
  %626 = vmatprep.mubr.bf16.mxu0 0
  %627 = vmatmul.mubr.bf16.gmra.mrb[0].mxu0 %v592
  %v628 = vpop.f32.mrb[0].mxu0
  %v629 = vadd.f32 %v577, %v628
  %v630 = vpop.f32.mrb[0].mxu0
  %v631 = vpop.f32.mrb[0].mxu0
  %v632 = vadd.f32 %v577, %v631
  %v633 = vpop.f32.mrb[0].mxu0
  %634 = vdwg.mxu0
  %v635 = vmax.f32 %v629, 0.0
  %v636 = vmax.f32 %v632, 0.0
  %v637 = vpack.c.bf16 %v636, %v635
  %v638 = vld [vmem:[%s10] sm:$0xf]
  %v639 = vld [vmem:[%s10 + $0x4] sm:$0xf]
  %v640 = vld [vmem:[%s10 + $0x8] sm:$0xf]
  %v641 = vld [vmem:[%s10 + $0xc] sm:$0xf]
  %v642 = vld [vmem:[%s10 + $0x10] sm:$0xf]
  %v643 = vld [vmem:[%s10 + $0x14] sm:$0xf]
  %v644 = vld [vmem:[%s10 + $0x18] sm:$0xf]
  %v645 = vld [vmem:[%s10 + $0x1c] sm:$0xf]
  %v646 = vld [vmem:[%s10 + $0x20] sm:$0xf]
  %v647 = vld [vmem:[%s10 + $0x24] sm:$0xf]
  %v648 = vld [vmem:[%s10 + $0x28] sm:$0xf]
  %v649 = vld [vmem:[%s10 + $0x2c] sm:$0xf]
  %v650 = vld [vmem:[%s10 + $0x30] sm:$0xf]
  %v651 = vld [vmem:[%s10 + $0x34] sm:$0xf]
  %v652 = vld [vmem:[%s10 + $0x38] sm:$0xf]
  %v653 = vld [vmem:[%s10 + $0x3c] sm:$0xf]
  %v654 = vld [vmem:[%s11] sm:$0x1]
  %v656 = vlaneseq
  %v657 = vshrl.u32 %v656, 7
  %v658 = vsub.s32 0, %v657
  %v659 = vrot.slane %v654, %v658
  %v677 = vunpack.c.l.b16 %v638
  %v678 = vunpack.c.l.b16 %v639
  %v679 = vunpack.c.l.b16 %v640
  %v680 = vunpack.c.l.b16 %v641
  %v681 = vunpack.c.l.b16 %v642
  %v682 = vunpack.c.l.b16 %v643
  %v683 = vunpack.c.l.b16 %v644
  %v684 = vunpack.c.l.b16 %v645
  %v685 = vunpack.c.l.b16 %v646
  %v686 = vunpack.c.l.b16 %v647
  %v687 = vunpack.c.l.b16 %v648
  %v688 = vunpack.c.l.b16 %v649
  %v689 = vunpack.c.l.b16 %v650
  %v690 = vunpack.c.l.b16 %v651
  %v691 = vunpack.c.l.b16 %v652
  %v692 = vunpack.c.l.b16 %v653
  %v693 = vpack.c.b16 %v678, %v677
  %v694 = vpack.c.b16 %v680, %v679
  %v695 = vpack.c.b16 %v682, %v681
  %v696 = vpack.c.b16 %v684, %v683
  %v697 = vpack.c.b16 %v686, %v685
  %v698 = vpack.c.b16 %v688, %v687
  %v699 = vpack.c.b16 %v690, %v689
  %v700 = vpack.c.b16 %v692, %v691
  %709 = vmatprep.subr.bf16.mxu0 0
  %710 = vmatpush1.bf16.msra.mxu0 %v693
  %711 = vmatprep.subr.bf16.mxu0 0
  %712 = vmatpush1.bf16.msra.mxu0 %v694
  %713 = vmatprep.subr.bf16.mxu0 0
  %714 = vmatpush1.bf16.msra.mxu0 %v695
  %715 = vmatprep.subr.bf16.mxu0 0
  %716 = vmatpush1.bf16.msra.mxu0 %v696
  %717 = vmatprep.subr.bf16.mxu0 0
  %718 = vmatpush1.bf16.msra.mxu0 %v697
  %719 = vmatprep.subr.bf16.mxu0 0
  %720 = vmatpush1.bf16.msra.mxu0 %v698
  %721 = vmatprep.subr.bf16.mxu0 0
  %722 = vmatpush1.bf16.msra.mxu0 %v699
  %723 = vmatprep.subr.bf16.mxu0 0
  %724 = vmatpush1.bf16.msra.mxu0 %v700
  %725 = vmatprep.subr.bf16.mxu0 0
  %726 = vmatpush1.bf16.msra.mxu0 0
  %727 = vmatprep.subr.bf16.mxu0 0
  %728 = vmatpush1.bf16.msra.mxu0 0
  %729 = vmatprep.subr.bf16.mxu0 0
  %730 = vmatpush1.bf16.msra.mxu0 0
  %731 = vmatprep.subr.bf16.mxu0 0
  %732 = vmatpush1.bf16.msra.mxu0 0
  %733 = vmatprep.subr.bf16.mxu0 0
  %734 = vmatpush1.bf16.msra.mxu0 0
  %735 = vmatprep.subr.bf16.mxu0 0
  %736 = vmatpush1.bf16.msra.mxu0 0
  %737 = vmatprep.subr.bf16.mxu0 0
  %738 = vmatpush1.bf16.msra.mxu0 0
  %739 = vmatprep.subr.bf16.mxu0 0
  %740 = vmatpush1.bf16.msra.mxu0 0
  %741 = vmatprep.mubr.bf16.mxu0 0
  %742 = vmatmul.mubr.bf16.gmra.mrb[0].mxu0 %v637
  %v743 = vpop.f32.mrb[0].mxu0
  %v744 = vadd.f32 %v659, %v743
  %v745 = vpop.f32.mrb[0].mxu0
  %v746 = vpop.f32.mrb[0].mxu0
  %v747 = vadd.f32 %v659, %v746
  %v748 = vpop.f32.mrb[0].mxu0
  %749 = vdwg.mxu0
  %v750 = vadd.f32 %v744, %v565
  %v751 = vadd.f32 %v747, %v566
  %v752 = vadd.f32 %v750, %v565
  %v753 = vadd.f32 %v751, %v566
  %v754 = vsel %vm74, %v752, 0.0
  %755 = vadd.xlane.f32.xlu0 %v754
  %v756 = vpop.xlane.xlu0 %755
  %v757 = vsel %vm74, %v753, 0.0
  %758 = vadd.xlane.f32.xlu0 %v757
  %v759 = vpop.xlane.xlu0 %758
  %v760 = vadd.f32 %v756, %v759
  %v761 = vmul.f32 %v760, 0.015625
  %v762 = vsub.f32 %v752, %v761
  %v763 = vsub.f32 %v753, %v761
  %v764 = vmul.f32 %v762, %v762
  %v765 = vmul.f32 %v763, %v763
  %v766 = vsel %vm74, %v764, 0.0
  %767 = vadd.xlane.f32.xlu0 %v766
  %v768 = vpop.xlane.xlu0 %767
  %v769 = vsel %vm74, %v765, 0.0
  %770 = vadd.xlane.f32.xlu0 %v769
  %v771 = vpop.xlane.xlu0 %770
  %v772 = vadd.f32 %v768, %v771
  %v773 = vmul.f32 %v772, 0.015625
  %v774 = vadd.f32 %v773, 1e-05
  %v775 = vrsqrt.pop %v774
  %v776 = vld [vmem:[%s12] sm:$0xff]
  %v777 = vmul.f32 %v775, %v776
  %779 = vset.pattern.permute.xlu0 0
  %780 = vperm.xlu0 %779, %v777
  %v781 = vpop.permute.xlu0 %780
  %v783 = vmul.f32 %v762, %v781
  %v784 = vmul.f32 %v763, %v781
  %v785 = vld [vmem:[%s13] sm:$0xff]
  %787 = vset.pattern.permute.xlu0 0
  %788 = vperm.xlu0 %787, %v785
  %v789 = vpop.permute.xlu0 %788
  %v791 = vadd.f32 %v783, %v789
  %v792 = vadd.f32 %v784, %v789
  %v793 = vcombine.high %v791, 0.0
  %v795 = vunpack.c.l.s4 1983009808
  %v796 = vunpack.c.0.s8 %v795
  %v797 = vlaneseq
  %v798 = vshrl.u32 %v797, 7
  %v799 = vsub.s32 %v796, %v798
  %v800 = vrot.slane %v791, %v799
  %v802 = vunpack.c.l.s4 1983009808
  %v803 = vunpack.c.0.s8 %v802
  %v804 = vlaneseq
  %v805 = vshrl.u32 %v804, 7
  %v806 = vsub.s32 %v803, %v805
  %v807 = vrot.slane %v793, %v806
  %v808 = vcombine.high %v792, 0.0
  %v810 = vunpack.c.l.s4 1983009808
  %v811 = vunpack.c.0.s8 %v810
  %v812 = vlaneseq
  %v813 = vshrl.u32 %v812, 7
  %v814 = vsub.s32 %v811, %v813
  %v815 = vrot.slane %v792, %v814
  %v817 = vunpack.c.l.s4 1983009808
  %v818 = vunpack.c.0.s8 %v817
  %v819 = vlaneseq
  %v820 = vshrl.u32 %v819, 7
  %v821 = vsub.s32 %v818, %v820
  %v822 = vrot.slane %v808, %v821
  %v823 = vcombine.low %v800, %v815
  %v824 = vcombine.high %v800, %v815
  %v826 = vunpack.c.l.s4 1934713408
  %v827 = vunpack.c.0.s8 %v826
  %v828 = vlaneseq
  %v829 = vshrl.u32 %v828, 7
  %v830 = vsub.s32 %v827, %v829
  %v831 = vrot.slane %v823, %v830
  %v833 = vunpack.c.l.s4 1934713408
  %v834 = vunpack.c.0.s8 %v833
  %v835 = vlaneseq
  %v836 = vshrl.u32 %v835, 7
  %v837 = vsub.s32 %v834, %v836
  %v838 = vrot.slane %v824, %v837
  %v839 = vcombine.low %v807, %v822
  %v840 = vcombine.high %v807, %v822
  %v842 = vunpack.c.l.s4 1934713408
  %v843 = vunpack.c.0.s8 %v842
  %v844 = vlaneseq
  %v845 = vshrl.u32 %v844, 7
  %v846 = vsub.s32 %v843, %v845
  %v847 = vrot.slane %v839, %v846
  %v849 = vunpack.c.l.s4 1934713408
  %v850 = vunpack.c.0.s8 %v849
  %v851 = vlaneseq
  %v852 = vshrl.u32 %v851, 7
  %v853 = vsub.s32 %v850, %v852
  %v854 = vrot.slane %v840, %v853
  %v855 = vcombine.high %v831, 0.0
  %v856 = vcombine.high %v838, 0.0
  %v857 = vcombine.high %v847, 0.0
  %v858 = vcombine.high %v854, 0.0
  %860 = vrot.lane.b32.xlu0 %v855, 32
  %v861 = vpop.permute.xlu0 %860
  %864 = vrot.lane.b32.xlu0 %v838, 64
  %v865 = vpop.permute.xlu0 %864
  %868 = vrot.lane.b32.xlu0 %v856, 96
  %v869 = vpop.permute.xlu0 %868
  %872 = vrot.lane.b32.xlu0 %v857, 32
  %v873 = vpop.permute.xlu0 %872
  %876 = vrot.lane.b32.xlu0 %v854, 64
  %v877 = vpop.permute.xlu0 %876
  %880 = vrot.lane.b32.xlu0 %v858, 96
  %v881 = vpop.permute.xlu0 %880
  %v883 = vsel %vm74, %v831, %v861
  %vm884 = vcmask 523264
  %v885 = vsel %vm884, %v883, %v865
  %vm886 = vcmask 785408
  %v887 = vsel %vm886, %v885, %v869
  %v888 = vsel %vm74, %v847, %v873
  %v889 = vsel %vm884, %v888, %v877
  %v890 = vsel %vm886, %v889, %v881
  %v893 = vcombine.low %v887, %v890
  %v895 = vunpack.c.l.s4 1983009808
  %v896 = vunpack.c.0.s8 %v895
  %v897 = vlaneseq
  %v898 = vshrl.u32 %v897, 7
  %v899 = vsub.s32 %v896, %v898
  %v900 = vrot.slane %v893, %v899
  %902 = vst [vmem:[%s14] sm:$0xf] %v900
  // Predicated region
  $region58: #{_encoder_forward_impl.1} parent=0 // pred_check
    _
  $region59: #{_encoder_forward_impl.1} parent=0 // pred_check_branch
    %904 = sbr.rel (0) target = $region61
  $region60: #{_encoder_forward_impl.1} parent=0 // pred_region
    _
  $region61: #{_encoder_forward_impl.1} parent=0 // pred_fallthru
    _
  // Predicated region
  $region62: #{_encoder_forward_impl.1} parent=0 // pred_check
    _
  $region63: #{_encoder_forward_impl.1} parent=0 // pred_check_branch
    %906 = sbr.rel (0) target = $region65
  $region64: #{_encoder_forward_impl.1} parent=0 // pred_region
    _
  $region65: #{_encoder_forward_impl.1} parent=0 // pred_fallthru
    _

</llo_original>
